<compile_context>
chip_gen: v5e
topology: v5e:2x2
jax: 0.10.0
libtpu: 0.0.40
codegen_flags: <defaults>
</compile_context>

<pallas_src>
import jax
import jax.numpy as jnp
from jax.experimental import pallas as pl
from jax.experimental.pallas import tpu as pltpu


def _round_up(n, m):
    return ((n + m - 1) // m) * m


# --------------------------------------------------------------------------
# Hardware introspection (per-generation tuning; safe fallbacks everywhere)
# --------------------------------------------------------------------------
def _device_kind():
    try:
        return jax.devices()[0].device_kind.lower()
    except Exception:
        return ""


def _vmem_capacity_bytes():
    try:
        return int(pltpu.get_tpu_info().vmem_capacity_bytes)
    except Exception:
        pass
    kind = _device_kind()
    if "v7" in kind:
        return 64 * 1024 * 1024
    if any(t in kind for t in ("v5", "v6")):
        return 128 * 1024 * 1024
    return 64 * 1024 * 1024  # conservative default when we cannot tell


def _is_pre_v6():
    # v5e and earlier have no bf16 VPU/EUP -> keep the f32 activation path.
    kind = _device_kind()
    return any(t in kind for t in ("v2", "v3", "v4", "v5"))


def _is_v7():
    return "v7" in _device_kind()


def select_act_dtype(matmul_dtype):
    """Inter-layer activation dtype: bf16 on v6e/v7x, f32 on v5e and earlier."""
    if matmul_dtype == jnp.bfloat16 and not _is_pre_v6():
        return jnp.bfloat16
    return jnp.float32


# --------------------------------------------------------------------------
# Kernel
# --------------------------------------------------------------------------
def make_mlp_kernel(num_layers, matmul_dtype, act_dtype):
    """Fused kernel: num_layers = num_hidden (Linear+BN+Tanh) + final Linear.

    refs layout: x_ref, [w, b] * num_layers, out_ref.
    The last (w, b) pair is the output Linear (no tanh).
    """

    def kernel(*refs):
        x_ref = refs[0]
        out_ref = refs[-1]
        h = x_ref[...]                      # already matmul_dtype (no cast)
        idx = 1
        for layer in range(num_layers):
            w_ref = refs[idx]
            b_ref = refs[idx + 1]
            idx += 2
            # Linear (+ folded BatchNorm affine); bf16 MXU inputs, f32 accumulate.
            acc = jnp.dot(
                h.astype(matmul_dtype),
                w_ref[...],
                preferred_element_type=jnp.float32,
            ) + b_ref[...]
            if layer < num_layers - 1:
                # Tanh (Dropout(0.5) is identity in eval mode).
                # bf16 tanh on v6e/v7x halves the intermediate footprint and
                # uses the bf16 EUP; f32 on v5e.
                h = jnp.tanh(acc.astype(act_dtype))
            else:
                out_ref[...] = acc.astype(out_ref.dtype)

    return kernel


# --------------------------------------------------------------------------
# BN folding (exact affine refactor, done in f32)
# --------------------------------------------------------------------------
def fold_bn_into_linear(w, b, gamma, beta, mean, var, eps=1e-5):
    inv_std = 1.0 / jnp.sqrt(var + eps)
    scale = gamma * inv_std                    # per-output-feature
    w_f = w * scale[None, :]
    b_f = b * scale + (beta - mean * scale)
    return w_f, b_f


# --------------------------------------------------------------------------
# Wrapper
# --------------------------------------------------------------------------
def mlp_forward(x, layer_params, out_w, out_b, *, matmul_dtype=jnp.bfloat16,
                eps=1e-5, lane=128, max_block_m=None):
    """x: (B, input_size).
    layer_params: list of (W[in,out], b[out], gamma, beta, running_mean, running_var).
    Returns (B, output_size).
    """
    batch, in_dim = x.shape
    out_dim = out_w.shape[1]

    is_v7 = _is_v7()
    act_dtype = select_act_dtype(matmul_dtype)
    mm_isz = jnp.dtype(matmul_dtype).itemsize
    act_isz = jnp.dtype(act_dtype).itemsize

    # Explicit scoped-VMEM limit (default is only 16 MiB on v5e / 32 MiB on
    # v6e/v7x, which would reject or shrink the intended weight residency).
    vmem_cap = _vmem_capacity_bytes()
    vmem_limit = int(min(int(0.8 * vmem_cap), 100 * 1024 * 1024))

    if max_block_m is None:
        # v7x has only 64 MiB VMEM per TensorCore; v5e/v6e have 128 MiB.
        max_block_m = 256 if is_v7 else 512

    # Fold BN into each hidden Linear, then append the output Linear.
    folded = [fold_bn_into_linear(w, b, g, bt, m, v, eps)
              for (w, b, g, bt, m, v) in layer_params]
    folded.append((out_w, out_b))
    num_layers = len(folded)

    # --- lane-dense padding ------------------------------------------------
    dims = [in_dim] + [w.shape[1] for (w, _) in folded]
    dims_p = [_round_up(d, lane) for d in dims]

    # Batch tile: multiple of 16 for bf16 MXU inputs ((16,128) vreg packing),
    # else 8.  On v7x make sure the batch grid has >= 2 steps when the batch
    # permits, so both TensorCores get work.
    align = 16 if matmul_dtype == jnp.bfloat16 else 8
    tm = min(_round_up(batch, align), max_block_m)
    batch_p = _round_up(batch, tm)
    if is_v7 and batch_p // tm == 1 and tm > align:
        tm = max(align, _round_up((batch + 1) // 2, align))
        batch_p = _round_up(batch, tm)
    grid_m = batch_p // tm

    # Input tile built directly in the matmul dtype (bf16): half the streamed
    # HBM->VMEM bytes and half the double-buffered tile footprint.
    x_p = jnp.zeros((batch_p, dims_p[0]), matmul_dtype)
    x_p = x_p.at[:batch, :in_dim].set(x.astype(matmul_dtype))

    # Padded (folded) weights / biases; weights in matmul_dtype, biases in f32.
    args = [x_p]
    w_bytes_total = 0
    for li, (w, b) in enumerate(folded):
        di_p, do_p = dims_p[li], dims_p[li + 1]
        w_p = jnp.zeros((di_p, do_p), jnp.float32).at[:w.shape[0], :w.shape[1]].set(
            w.astype(jnp.float32))
        b_p = jnp.zeros((1, do_p), jnp.float32).at[0, :b.shape[0]].set(
            b.astype(jnp.float32))
        args.append(w_p.astype(matmul_dtype))
        args.append(b_p)
        w_bytes_total += w_p.size * mm_isz + b_p.size * 4

    def build_in_specs(single_buffer_weights):
        specs = [pl.BlockSpec((tm, dims_p[0]), lambda i: (i, 0))]
        for li in range(num_layers):
            di_p, do_p = dims_p[li], dims_p[li + 1]
            kw = {}
            if single_buffer_weights:
                # Constant block index across the whole grid -> one resident
                # buffer is enough; halves resident-weight VMEM.
                kw = dict(pipeline_mode=pl.Buffered(buffer_count=1))
            specs.append(pl.BlockSpec((di_p, do_p), lambda i: (0, 0), **kw))
            specs.append(pl.BlockSpec((1, do_p), lambda i: (0, 0), **kw))
        return specs

    def vmem_estimate(weight_buffers):
        est = w_bytes_total * weight_buffers                 # resident weights
        est += 2 * tm * dims_p[0] * mm_isz                   # double-buffered x tile
        est += 2 * tm * dims_p[-1] * 4                       # double-buffered out tile
        est += 2 * tm * max(dims_p) * (4 + act_isz)          # live acc (f32) + h
        return est

    out_specs = pl.BlockSpec((tm, dims_p[-1]), lambda i: (i, 0))
    out_shape = jax.ShapeDtypeStruct((batch_p, dims_p[-1]), jnp.float32)
    kernel = make_mlp_kernel(num_layers, matmul_dtype, act_dtype)

    # Advisory cost estimate so XLA schedules the surrounding pad/slice ops.
    flops = 2 * batch_p * sum(dims_p[i] * dims_p[i + 1] for i in range(num_layers))
    transcendentals = batch_p * sum(dims_p[1:-1])
    bytes_accessed = int(x_p.size * mm_isz + w_bytes_total + batch_p * dims_p[-1] * 4)
    cost = pl.CostEstimate(flops=int(flops),
                           transcendentals=int(transcendentals),
                           bytes_accessed=bytes_accessed)

    def run(single_buffer_weights):
        # TODO(synk): for very wide layers that exceed the residency budget,
        # switch to a K/N-tiled streaming grid (accumulator + pl.when
        # init/finalize) instead of full weight residency.
        assert vmem_estimate(1 if single_buffer_weights else 2) <= vmem_limit, (
            "weights too large for fused residency")
        return pl.pallas_call(
            kernel,
            out_shape=out_shape,
            grid=(grid_m,),
            in_specs=build_in_specs(single_buffer_weights),
            out_specs=out_specs,
            compiler_params=pltpu.CompilerParams(
                dimension_semantics=("parallel",),
                vmem_limit_bytes=vmem_limit,
            ),
            cost_estimate=cost,
        )(*args)

    try:
        y_p = run(single_buffer_weights=True)
    except Exception:
        # pipeline_mode=pl.Buffered(1) not supported by this jax / config:
        # fall back to default double-buffered resident weights.
        y_p = run(single_buffer_weights=False)

    return y_p[:batch, :out_dim].astype(x.dtype)


# --------------------------------------------------------------------------
# Synthetic PyTorch-shaped parameters (no checkpoint)
# --------------------------------------------------------------------------
def init_params(key, input_size, hidden_sizes, output_size):
    layer_params = []
    sizes = [input_size] + list(hidden_sizes)
    for i in range(len(hidden_sizes)):
        fan_in, fan_out = sizes[i], sizes[i + 1]
        key, kw, kb, kg, kbt, km, kv = jax.random.split(key, 7)
        bound = 1.0 / jnp.sqrt(fan_in)
        # PyTorch Linear stores weight as (out, in); we keep (in, out) here.
        w = jax.random.uniform(kw, (fan_in, fan_out), jnp.float32, -bound, bound)
        b = jax.random.uniform(kb, (fan_out,), jnp.float32, -bound, bound)
        gamma = 1.0 + 0.1 * jax.random.normal(kg, (fan_out,), jnp.float32)
        beta = 0.1 * jax.random.normal(kbt, (fan_out,), jnp.float32)
        running_mean = 0.1 * jax.random.normal(km, (fan_out,), jnp.float32)
        running_var = 0.5 + jnp.abs(jax.random.normal(kv, (fan_out,), jnp.float32))
        layer_params.append((w, b, gamma, beta, running_mean, running_var))

    fan_in = hidden_sizes[-1]
    key, kw, kb = jax.random.split(key, 3)
    bound = 1.0 / jnp.sqrt(fan_in)
    out_w = jax.random.uniform(kw, (fan_in, output_size), jnp.float32, -bound, bound)
    out_b = jax.random.uniform(kb, (output_size,), jnp.float32, -bound, bound)
    return layer_params, out_w, out_b


# --------------------------------------------------------------------------
# Pure-JAX reference (mirrors the kernel's math & dtypes)
# --------------------------------------------------------------------------
def mlp_reference(x, layer_params, out_w, out_b, matmul_dtype=jnp.float32,
                  act_dtype=jnp.float32, eps=1e-5):
    h = x.astype(matmul_dtype)
    for (w, b, g, bt, m, v) in layer_params:
        w_f, b_f = fold_bn_into_linear(w, b, g, bt, m, v, eps)
        acc = jnp.dot(h.astype(matmul_dtype), w_f.astype(matmul_dtype),
                      preferred_element_type=jnp.float32) + b_f
        h = jnp.tanh(acc.astype(act_dtype))
    y = jnp.dot(h.astype(matmul_dtype), out_w.astype(matmul_dtype),
                preferred_element_type=jnp.float32) + out_b
    return y.astype(x.dtype)


if __name__ == "__main__":
    # NOTE: these demo shapes are padding-dominated (mandatory 128-lane
    # padding); benchmark / tune TM, buffering and dtypes with realistic
    # hidden widths (>= 512) — conclusions do not transfer from toy shapes.
    input_size = 16
    hidden_sizes = [32, 32]
    output_size = 8
    batch = 8

    key = jax.random.PRNGKey(0)
    key, kx = jax.random.split(key)
    x = jax.random.normal(kx, (batch, input_size), jnp.float32)

    layer_params, out_w, out_b = init_params(key, input_size, hidden_sizes, output_size)

    matmul_dtype = jnp.bfloat16
    act_dtype = select_act_dtype(matmul_dtype)

    y = mlp_forward(x, layer_params, out_w, out_b, matmul_dtype=matmul_dtype)
    y = jax.block_until_ready(y)
    assert y.shape == (batch, output_size)

    # Reference with the same matmul / activation dtypes as the kernel.
    y_ref = mlp_reference(x, layer_params, out_w, out_b,
                          matmul_dtype=matmul_dtype, act_dtype=act_dtype)
    tol = 5e-3 if act_dtype == jnp.bfloat16 else 1e-4
    assert jnp.allclose(y, y_ref, atol=tol, rtol=tol), "mismatch vs matched-dtype reference"

    # Loose sanity check vs a full-f32 reference (bounds bf16 rounding error).
    y_f32 = mlp_reference(x, layer_params, out_w, out_b,
                          matmul_dtype=jnp.float32, act_dtype=jnp.float32)
    assert jnp.max(jnp.abs(y - y_f32)) < 7.5e-2, "bf16 rounding error too large"

    print("KERNEL_OK")
</pallas_src>

<mosaic_0001>
module attributes {stable_mosaic.version = 11 : i64} {
  func.func @kernel(%arg0: i32, %arg1: memref<16x128xbf16, #tpu.memory_space<vmem>>, %arg2: memref<128x128xbf16, #tpu.memory_space<vmem>>, %arg3: memref<1x128xf32, #tpu.memory_space<vmem>>, %arg4: memref<128x128xbf16, #tpu.memory_space<vmem>>, %arg5: memref<1x128xf32, #tpu.memory_space<vmem>>, %arg6: memref<128x128xbf16, #tpu.memory_space<vmem>>, %arg7: memref<1x128xf32, #tpu.memory_space<vmem>>, %arg8: memref<16x128xf32, #tpu.memory_space<vmem>>) attributes {dimension_semantics = [#tpu.dimension_semantics<parallel>], iteration_bounds = array<i64: 1>, scalar_prefetch = 0 : i64, scratch_operands = 0 : i64, tpu.core_type = #tpu.core_type<tc>, window_params = [{transform_indices = @transform_0, window_bounds = array<i64: 16, 128>}, {pipeline_mode = #tpu.pipeline_mode<synchronous>, transform_indices = @transform_1, window_bounds = array<i64: 128, 128>}, {pipeline_mode = #tpu.pipeline_mode<synchronous>, transform_indices = @transform_2, window_bounds = array<i64: 1, 128>}, {pipeline_mode = #tpu.pipeline_mode<synchronous>, transform_indices = @transform_3, window_bounds = array<i64: 128, 128>}, {pipeline_mode = #tpu.pipeline_mode<synchronous>, transform_indices = @transform_4, window_bounds = array<i64: 1, 128>}, {pipeline_mode = #tpu.pipeline_mode<synchronous>, transform_indices = @transform_5, window_bounds = array<i64: 128, 128>}, {pipeline_mode = #tpu.pipeline_mode<synchronous>, transform_indices = @transform_6, window_bounds = array<i64: 1, 128>}, {transform_indices = @transform_7, window_bounds = array<i64: 16, 128>}]} {
    %c0 = arith.constant 0 : index
    %c0_0 = arith.constant 0 : index
    %0 = vector.load %arg1[%c0, %c0_0] : memref<16x128xbf16, #tpu.memory_space<vmem>>, vector<16x128xbf16>
    %c0_1 = arith.constant 0 : index
    %c0_2 = arith.constant 0 : index
    %1 = vector.load %arg2[%c0_1, %c0_2] : memref<128x128xbf16, #tpu.memory_space<vmem>>, vector<128x128xbf16>
    %cst = arith.constant dense<0.000000e+00> : vector<16x128xf32>
    %2 = tpu.matmul %0, %1, %cst {dimension_numbers = #tpu.dot_dimension_numbers<[1], [0], [0], [1], [0, 0, 1, 1], [], []>} : vector<16x128xbf16>, vector<128x128xbf16>, vector<16x128xf32> -> vector<16x128xf32>
    %c0_3 = arith.constant 0 : index
    %c0_4 = arith.constant 0 : index
    %3 = vector.load %arg3[%c0_3, %c0_4] : memref<1x128xf32, #tpu.memory_space<vmem>>, vector<1x128xf32>
    %4 = vector.broadcast %3 : vector<1x128xf32> to vector<16x128xf32>
    %5 = arith.addf %2, %4 : vector<16x128xf32>
    %6 = arith.truncf %5 : vector<16x128xf32> to vector<16x128xbf16>
    %7 = math.tanh %6 : vector<16x128xbf16>
    %c0_5 = arith.constant 0 : index
    %c0_6 = arith.constant 0 : index
    %8 = vector.load %arg4[%c0_5, %c0_6] : memref<128x128xbf16, #tpu.memory_space<vmem>>, vector<128x128xbf16>
    %cst_7 = arith.constant dense<0.000000e+00> : vector<16x128xf32>
    %9 = tpu.matmul %7, %8, %cst_7 {dimension_numbers = #tpu.dot_dimension_numbers<[1], [0], [0], [1], [0, 0, 1, 1], [], []>} : vector<16x128xbf16>, vector<128x128xbf16>, vector<16x128xf32> -> vector<16x128xf32>
    %c0_8 = arith.constant 0 : index
    %c0_9 = arith.constant 0 : index
    %10 = vector.load %arg5[%c0_8, %c0_9] : memref<1x128xf32, #tpu.memory_space<vmem>>, vector<1x128xf32>
    %11 = vector.broadcast %10 : vector<1x128xf32> to vector<16x128xf32>
    %12 = arith.addf %9, %11 : vector<16x128xf32>
    %13 = arith.truncf %12 : vector<16x128xf32> to vector<16x128xbf16>
    %14 = math.tanh %13 : vector<16x128xbf16>
    %c0_10 = arith.constant 0 : index
    %c0_11 = arith.constant 0 : index
    %15 = vector.load %arg6[%c0_10, %c0_11] : memref<128x128xbf16, #tpu.memory_space<vmem>>, vector<128x128xbf16>
    %cst_12 = arith.constant dense<0.000000e+00> : vector<16x128xf32>
    %16 = tpu.matmul %14, %15, %cst_12 {dimension_numbers = #tpu.dot_dimension_numbers<[1], [0], [0], [1], [0, 0, 1, 1], [], []>} : vector<16x128xbf16>, vector<128x128xbf16>, vector<16x128xf32> -> vector<16x128xf32>
    %c0_13 = arith.constant 0 : index
    %c0_14 = arith.constant 0 : index
    %17 = vector.load %arg7[%c0_13, %c0_14] : memref<1x128xf32, #tpu.memory_space<vmem>>, vector<1x128xf32>
    %18 = vector.broadcast %17 : vector<1x128xf32> to vector<16x128xf32>
    %19 = arith.addf %16, %18 : vector<16x128xf32>
    %c0_15 = arith.constant 0 : index
    %c0_16 = arith.constant 0 : index
    %20 = vector.load %arg8[%c0_15, %c0_16] : memref<16x128xf32, #tpu.memory_space<vmem>>, vector<16x128xf32>
    tpu.vector_store %arg8[%c0_15, %c0_16], %19 {strides = array<i32>} : memref<16x128xf32, #tpu.memory_space<vmem>>, vector<16x128xf32>,
    return
  }
  func.func @transform_0(%arg0: i32) -> (i32, i32) {
    %c0_i32 = arith.constant 0 : i32
    %c0_i32_0 = arith.constant 0 : i32
    return %arg0, %c0_i32 : i32, i32
  }
  func.func @transform_1(%arg0: i32) -> (i32, i32) {
    %c0_i32 = arith.constant 0 : i32
    %c0_i32_0 = arith.constant 0 : i32
    %c0_i32_1 = arith.constant 0 : i32
    return %c0_i32, %c0_i32_0 : i32, i32
  }
  func.func @transform_2(%arg0: i32) -> (i32, i32) {
    %c0_i32 = arith.constant 0 : i32
    %c0_i32_0 = arith.constant 0 : i32
    %c0_i32_1 = arith.constant 0 : i32
    return %c0_i32, %c0_i32_0 : i32, i32
  }
  func.func @transform_3(%arg0: i32) -> (i32, i32) {
    %c0_i32 = arith.constant 0 : i32
    %c0_i32_0 = arith.constant 0 : i32
    %c0_i32_1 = arith.constant 0 : i32
    return %c0_i32, %c0_i32_0 : i32, i32
  }
  func.func @transform_4(%arg0: i32) -> (i32, i32) {
    %c0_i32 = arith.constant 0 : i32
    %c0_i32_0 = arith.constant 0 : i32
    %c0_i32_1 = arith.constant 0 : i32
    return %c0_i32, %c0_i32_0 : i32, i32
  }
  func.func @transform_5(%arg0: i32) -> (i32, i32) {
    %c0_i32 = arith.constant 0 : i32
    %c0_i32_0 = arith.constant 0 : i32
    %c0_i32_1 = arith.constant 0 : i32
    return %c0_i32, %c0_i32_0 : i32, i32
  }
  func.func @transform_6(%arg0: i32) -> (i32, i32) {
    %c0_i32 = arith.constant 0 : i32
    %c0_i32_0 = arith.constant 0 : i32
    %c0_i32_1 = arith.constant 0 : i32
    return %c0_i32, %c0_i32_0 : i32, i32
  }
  func.func @transform_7(%arg0: i32) -> (i32, i32) {
    %c0_i32 = arith.constant 0 : i32
    %c0_i32_0 = arith.constant 0 : i32
    return %arg0, %c0_i32 : i32, i32
  }
}

module attributes {stable_mosaic.version = 11 : i64} {
  func.func @kernel(%arg0: i32, %arg1: memref<16x128xbf16, #tpu.memory_space<vmem>>, %arg2: memref<128x128xbf16, #tpu.memory_space<vmem>>, %arg3: memref<1x128xf32, #tpu.memory_space<vmem>>, %arg4: memref<128x128xbf16, #tpu.memory_space<vmem>>, %arg5: memref<1x128xf32, #tpu.memory_space<vmem>>, %arg6: memref<128x128xbf16, #tpu.memory_space<vmem>>, %arg7: memref<1x128xf32, #tpu.memory_space<vmem>>, %arg8: memref<16x128xf32, #tpu.memory_space<vmem>>) attributes {dimension_semantics = [#tpu.dimension_semantics<parallel>], iteration_bounds = array<i64: 1>, scalar_prefetch = 0 : i64, scratch_operands = 0 : i64, tpu.core_type = #tpu.core_type<tc>, window_params = [{transform_indices = @transform_0, window_bounds = array<i64: 16, 128>}, {pipeline_mode = #tpu.pipeline_mode<synchronous>, transform_indices = @transform_1, window_bounds = array<i64: 128, 128>}, {pipeline_mode = #tpu.pipeline_mode<synchronous>, transform_indices = @transform_2, window_bounds = array<i64: 1, 128>}, {pipeline_mode = #tpu.pipeline_mode<synchronous>, transform_indices = @transform_3, window_bounds = array<i64: 128, 128>}, {pipeline_mode = #tpu.pipeline_mode<synchronous>, transform_indices = @transform_4, window_bounds = array<i64: 1, 128>}, {pipeline_mode = #tpu.pipeline_mode<synchronous>, transform_indices = @transform_5, window_bounds = array<i64: 128, 128>}, {pipeline_mode = #tpu.pipeline_mode<synchronous>, transform_indices = @transform_6, window_bounds = array<i64: 1, 128>}, {transform_indices = @transform_7, window_bounds = array<i64: 16, 128>}]} {
    %c0 = arith.constant 0 : index
    %c0_0 = arith.constant 0 : index
    %0 = vector.load %arg1[%c0, %c0_0] : memref<16x128xbf16, #tpu.memory_space<vmem>>, vector<16x128xbf16>
    %c0_1 = arith.constant 0 : index
    %c0_2 = arith.constant 0 : index
    %1 = vector.load %arg2[%c0_1, %c0_2] : memref<128x128xbf16, #tpu.memory_space<vmem>>, vector<128x128xbf16>
    %cst = arith.constant dense<0.000000e+00> : vector<16x128xf32>
    %2 = tpu.matmul %0, %1, %cst {dimension_numbers = #tpu.dot_dimension_numbers<[1], [0], [0], [1], [0, 0, 1, 1], [], []>} : vector<16x128xbf16>, vector<128x128xbf16>, vector<16x128xf32> -> vector<16x128xf32>
    %c0_3 = arith.constant 0 : index
    %c0_4 = arith.constant 0 : index
    %3 = vector.load %arg3[%c0_3, %c0_4] : memref<1x128xf32, #tpu.memory_space<vmem>>, vector<1x128xf32>
    %4 = vector.broadcast %3 : vector<1x128xf32> to vector<16x128xf32>
    %5 = arith.addf %2, %4 : vector<16x128xf32>
    %6 = arith.truncf %5 : vector<16x128xf32> to vector<16x128xbf16>
    %7 = math.tanh %6 : vector<16x128xbf16>
    %c0_5 = arith.constant 0 : index
    %c0_6 = arith.constant 0 : index
    %8 = vector.load %arg4[%c0_5, %c0_6] : memref<128x128xbf16, #tpu.memory_space<vmem>>, vector<128x128xbf16>
    %cst_7 = arith.constant dense<0.000000e+00> : vector<16x128xf32>
    %9 = tpu.matmul %7, %8, %cst_7 {dimension_numbers = #tpu.dot_dimension_numbers<[1], [0], [0], [1], [0, 0, 1, 1], [], []>} : vector<16x128xbf16>, vector<128x128xbf16>, vector<16x128xf32> -> vector<16x128xf32>
    %c0_8 = arith.constant 0 : index
    %c0_9 = arith.constant 0 : index
    %10 = vector.load %arg5[%c0_8, %c0_9] : memref<1x128xf32, #tpu.memory_space<vmem>>, vector<1x128xf32>
    %11 = vector.broadcast %10 : vector<1x128xf32> to vector<16x128xf32>
    %12 = arith.addf %9, %11 : vector<16x128xf32>
    %13 = arith.truncf %12 : vector<16x128xf32> to vector<16x128xbf16>
    %14 = math.tanh %13 : vector<16x128xbf16>
    %c0_10 = arith.constant 0 : index
    %c0_11 = arith.constant 0 : index
    %15 = vector.load %arg6[%c0_10, %c0_11] : memref<128x128xbf16, #tpu.memory_space<vmem>>, vector<128x128xbf16>
    %cst_12 = arith.constant dense<0.000000e+00> : vector<16x128xf32>
    %16 = tpu.matmul %14, %15, %cst_12 {dimension_numbers = #tpu.dot_dimension_numbers<[1], [0], [0], [1], [0, 0, 1, 1], [], []>} : vector<16x128xbf16>, vector<128x128xbf16>, vector<16x128xf32> -> vector<16x128xf32>
    %c0_13 = arith.constant 0 : index
    %c0_14 = arith.constant 0 : index
    %17 = vector.load %arg7[%c0_13, %c0_14] : memref<1x128xf32, #tpu.memory_space<vmem>>, vector<1x128xf32>
    %18 = vector.broadcast %17 : vector<1x128xf32> to vector<16x128xf32>
    %19 = arith.addf %16, %18 : vector<16x128xf32>
    %c0_15 = arith.constant 0 : index
    %c0_16 = arith.constant 0 : index
    %20 = vector.load %arg8[%c0_15, %c0_16] : memref<16x128xf32, #tpu.memory_space<vmem>>, vector<16x128xf32>
    tpu.vector_store %arg8[%c0_15, %c0_16], %19 {strides = array<i32>} : memref<16x128xf32, #tpu.memory_space<vmem>>, vector<16x128xf32>,
    return
  }
  func.func @transform_0(%arg0: i32) -> (i32, i32) {
    %c0_i32 = arith.constant 0 : i32
    %c0_i32_0 = arith.constant 0 : i32
    return %arg0, %c0_i32 : i32, i32
  }
  func.func @transform_1(%arg0: i32) -> (i32, i32) {
    %c0_i32 = arith.constant 0 : i32
    %c0_i32_0 = arith.constant 0 : i32
    %c0_i32_1 = arith.constant 0 : i32
    return %c0_i32, %c0_i32_0 : i32, i32
  }
  func.func @transform_2(%arg0: i32) -> (i32, i32) {
    %c0_i32 = arith.constant 0 : i32
    %c0_i32_0 = arith.constant 0 : i32
    %c0_i32_1 = arith.constant 0 : i32
    return %c0_i32, %c0_i32_0 : i32, i32
  }
  func.func @transform_3(%arg0: i32) -> (i32, i32) {
    %c0_i32 = arith.constant 0 : i32
    %c0_i32_0 = arith.constant 0 : i32
    %c0_i32_1 = arith.constant 0 : i32
    return %c0_i32, %c0_i32_0 : i32, i32
  }
  func.func @transform_4(%arg0: i32) -> (i32, i32) {
    %c0_i32 = arith.constant 0 : i32
    %c0_i32_0 = arith.constant 0 : i32
    %c0_i32_1 = arith.constant 0 : i32
    return %c0_i32, %c0_i32_0 : i32, i32
  }
  func.func @transform_5(%arg0: i32) -> (i32, i32) {
    %c0_i32 = arith.constant 0 : i32
    %c0_i32_0 = arith.constant 0 : i32
    %c0_i32_1 = arith.constant 0 : i32
    return %c0_i32, %c0_i32_0 : i32, i32
  }
  func.func @transform_6(%arg0: i32) -> (i32, i32) {
    %c0_i32 = arith.constant 0 : i32
    %c0_i32_0 = arith.constant 0 : i32
    %c0_i32_1 = arith.constant 0 : i32
    return %c0_i32, %c0_i32_0 : i32, i32
  }
  func.func @transform_7(%arg0: i32) -> (i32, i32) {
    %c0_i32 = arith.constant 0 : i32
    %c0_i32_0 = arith.constant 0 : i32
    return %arg0, %c0_i32 : i32, i32
  }
}

</mosaic_0001>

<llo_original>
// kernel: tpu_custom_call.1
$region0: #{tpu_custom_call.1}
  #allocation0 [shape = 'u32[]', space=smem, size = 0x4, offset = 0x4, fixed_abs, tag = 'smem constant byte address 0x4 - core index']
  #allocation1 [shape = 'u32[72,128]{1,0:T(1,128)}', space=vmem, size = 0x9000, scoped, tag = 'internal scratch']
  %s0 = inlined_call_operand.hbm [shape: bf16[16,128], index: 0, kind: input, shape index: {}]
  %s1 = inlined_call_operand.hbm [shape: bf16[128,128], index: 1, kind: input, shape index: {}]
  %s2 = inlined_call_operand.vmem [shape: f32[1,128], index: 2, kind: input, shape index: {}]
  %s3 = inlined_call_operand.hbm [shape: bf16[128,128], index: 3, kind: input, shape index: {}]
  %s4 = inlined_call_operand.vmem [shape: f32[1,128], index: 4, kind: input, shape index: {}]
  %s5 = inlined_call_operand.hbm [shape: bf16[128,128], index: 5, kind: input, shape index: {}]
  %s6 = inlined_call_operand.vmem [shape: f32[1,128], index: 6, kind: input, shape index: {}]
  %s7 = inlined_call_operand.hbm [shape: f32[16,128], index: 7, kind: output, shape index: {}]
  %s8 = sld [smem:[#allocation0]]
  $region54: #{tpu_custom_call.1} parent=0
    _
  %s10 = ssub.s32 1, %s8
  %s11 = scalar_select 0, %s10, %s8
  $region1: #{tpu_custom_call.1} parent=0
    #allocation2 [shape = 'u8[4096]{0}', space=vmem, size = 0x1000, scoped, tag = 'input window, operand 0, single buffered']
    #allocation3 [shape = 's32[1]{0}', space=sflag, size = 0x4, scoped, tag = 'scoped memory for tpu_custom_call.1']
    #allocation4 [shape = 's32[1]{0}', space=sflag, size = 0x4, scoped, tag = 'scoped memory for tpu_custom_call.1']
    #allocation5 [shape = 'u8[32768]{0}', space=vmem, size = 0x8000, scoped, tag = 'input window, operand 1, single buffered']
    #allocation6 [shape = 's32[1]{0}', space=sflag, size = 0x4, scoped, tag = 'scoped memory for tpu_custom_call.1']
    #allocation7 [shape = 'u8[32768]{0}', space=vmem, size = 0x8000, scoped, tag = 'input window, operand 3, single buffered']
    #allocation8 [shape = 'u8[32768]{0}', space=vmem, size = 0x8000, scoped, tag = 'input window, operand 5, single buffered']
    #allocation9 [shape = 's32[1]{0}', space=sflag, size = 0x4, scoped, tag = 'scoped memory for tpu_custom_call.1']
    #allocation10 [shape = 'u8[8192]{0}', space=vmem, size = 0x2000, scoped, tag = 'output window, operand 0, single buffered']
    %12 = vsyncpa [#allocation3], 0
    %13 = vsyncpa [#allocation6], 0
    %14 = vsyncpa [#allocation9], 0
    %15 = vsyncpa [#allocation4], 0
    // Predicated region
    $region2: #{tpu_custom_call.1} parent=1 // pred_check
      _
    $region3: #{tpu_custom_call.1} parent=1 // pred_check_branch
      %17 = sbr.rel (0) target = $region5
    $region4: #{tpu_custom_call.1} parent=1 // pred_region
      %19 = vsyncadd [#allocation3], 0
      %s20 = sshll.u32 %s0, 4
      %s21 = int_to_ptr.hbm [resolvable:$true] %s20
      %s22 = sshll.u32 [#allocation2], 4
      %s23 = int_to_ptr.vmem [resolvable:$true] %s22
      %28 = dma.hbm_to_vmem [thread:$0]  %s21, 128, %s23, [#allocation3], 64, 64, 4
    $region5: #{tpu_custom_call.1} parent=1 // pred_fallthru
      _
    // Predicated region
    $region6: #{tpu_custom_call.1} parent=1 // pred_check
      _
    $region7: #{tpu_custom_call.1} parent=1 // pred_check_branch
      %30 = sbr.rel (0) target = $region9
    $region8: #{tpu_custom_call.1} parent=1 // pred_region
      %32 = vsyncadd [#allocation6], 0
      %s33 = sshll.u32 %s1, 4
      %s34 = int_to_ptr.hbm [resolvable:$true] %s33
      %s35 = sshll.u32 [#allocation5], 4
      %s36 = int_to_ptr.vmem [resolvable:$true] %s35
      %41 = dma.hbm_to_vmem [thread:$0]  %s34, 1024, %s36, [#allocation6], 64, 64, 4
    $region9: #{tpu_custom_call.1} parent=1 // pred_fallthru
      _
    // Predicated region
    $region10: #{tpu_custom_call.1} parent=1 // pred_check
      _
    $region11: #{tpu_custom_call.1} parent=1 // pred_check_branch
      %43 = sbr.rel (0) target = $region13
    $region12: #{tpu_custom_call.1} parent=1 // pred_region
      _
    $region13: #{tpu_custom_call.1} parent=1 // pred_fallthru
      _
    // Predicated region
    $region14: #{tpu_custom_call.1} parent=1 // pred_check
      _
    $region15: #{tpu_custom_call.1} parent=1 // pred_check_branch
      %45 = sbr.rel (0) target = $region17
    $region16: #{tpu_custom_call.1} parent=1 // pred_region
      %47 = vsyncadd [#allocation6], 0
      %s48 = sshll.u32 %s3, 4
      %s49 = int_to_ptr.hbm [resolvable:$true] %s48
      %s50 = sshll.u32 [#allocation7], 4
      %s51 = int_to_ptr.vmem [resolvable:$true] %s50
      %56 = dma.hbm_to_vmem [thread:$0]  %s49, 1024, %s51, [#allocation6], 64, 64, 4
    $region17: #{tpu_custom_call.1} parent=1 // pred_fallthru
      _
    // Predicated region
    $region18: #{tpu_custom_call.1} parent=1 // pred_check
      _
    $region19: #{tpu_custom_call.1} parent=1 // pred_check_branch
      %58 = sbr.rel (0) target = $region21
    $region20: #{tpu_custom_call.1} parent=1 // pred_region
      _
    $region21: #{tpu_custom_call.1} parent=1 // pred_fallthru
      _
    // Predicated region
    $region22: #{tpu_custom_call.1} parent=1 // pred_check
      _
    $region23: #{tpu_custom_call.1} parent=1 // pred_check_branch
      %60 = sbr.rel (0) target = $region25
    $region24: #{tpu_custom_call.1} parent=1 // pred_region
      %62 = vsyncadd [#allocation9], 0
      %s63 = sshll.u32 %s5, 4
      %s64 = int_to_ptr.hbm [resolvable:$true] %s63
      %s65 = sshll.u32 [#allocation8], 4
      %s66 = int_to_ptr.vmem [resolvable:$true] %s65
      %71 = dma.hbm_to_vmem [thread:$0]  %s64, 1024, %s66, [#allocation9], 64, 64, 4
    $region25: #{tpu_custom_call.1} parent=1 // pred_fallthru
      _
    // Predicated region
    $region26: #{tpu_custom_call.1} parent=1 // pred_check
      _
    $region27: #{tpu_custom_call.1} parent=1 // pred_check_branch
      %73 = sbr.rel (0) target = $region29
    $region28: #{tpu_custom_call.1} parent=1 // pred_region
      _
    $region29: #{tpu_custom_call.1} parent=1 // pred_fallthru
      _
    // Predicated region
    $region30: #{tpu_custom_call.1} parent=1 // pred_check
      _
    $region31: #{tpu_custom_call.1} parent=1 // pred_check_branch
      %75 = sbr.rel (0) target = $region33
    $region32: #{tpu_custom_call.1} parent=1 // pred_region
      %77 = dma.done [#allocation3], 128
    $region33: #{tpu_custom_call.1} parent=1 // pred_fallthru
      _
    // Predicated region
    $region34: #{tpu_custom_call.1} parent=1 // pred_check
      _
    $region35: #{tpu_custom_call.1} parent=1 // pred_check_branch
      %79 = sbr.rel (0) target = $region37
    $region36: #{tpu_custom_call.1} parent=1 // pred_region
      %81 = dma.done [#allocation6], 1024
    $region37: #{tpu_custom_call.1} parent=1 // pred_fallthru
      _
    // Predicated region
    $region38: #{tpu_custom_call.1} parent=1 // pred_check
      _
    $region39: #{tpu_custom_call.1} parent=1 // pred_check_branch
      %83 = sbr.rel (0) target = $region41
    $region40: #{tpu_custom_call.1} parent=1 // pred_region
      %85 = dma.done [#allocation6], 1024
    $region41: #{tpu_custom_call.1} parent=1 // pred_fallthru
      _
    // Predicated region
    $region42: #{tpu_custom_call.1} parent=1 // pred_check
      _
    $region43: #{tpu_custom_call.1} parent=1 // pred_check_branch
      %87 = sbr.rel (0) target = $region45
    $region44: #{tpu_custom_call.1} parent=1 // pred_region
      %89 = dma.done [#allocation9], 1024
    $region45: #{tpu_custom_call.1} parent=1 // pred_fallthru
      _
    %v90 = vld [vmem:[#allocation2] sm:$0xf]
    %v91 = vld [vmem:[#allocation2 + $0x4] sm:$0xf]
    %v92 = vld [vmem:[#allocation5] sm:$0xf]
    %v93 = vld [vmem:[#allocation5 + $0x4] sm:$0xf]
    %v94 = vld [vmem:[#allocation5 + $0x8] sm:$0xf]
    %v95 = vld [vmem:[#allocation5 + $0xc] sm:$0xf]
    %v96 = vld [vmem:[#allocation5 + $0x10] sm:$0xf]
    %v97 = vld [vmem:[#allocation5 + $0x14] sm:$0xf]
    %v98 = vld [vmem:[#allocation5 + $0x18] sm:$0xf]
    %v99 = vld [vmem:[#allocation5 + $0x1c] sm:$0xf]
    %v100 = vld [vmem:[#allocation5 + $0x20] sm:$0xf]
    %v101 = vld [vmem:[#allocation5 + $0x24] sm:$0xf]
    %v102 = vld [vmem:[#allocation5 + $0x28] sm:$0xf]
    %v103 = vld [vmem:[#allocation5 + $0x2c] sm:$0xf]
    %v104 = vld [vmem:[#allocation5 + $0x30] sm:$0xf]
    %v105 = vld [vmem:[#allocation5 + $0x34] sm:$0xf]
    %v106 = vld [vmem:[#allocation5 + $0x38] sm:$0xf]
    %v107 = vld [vmem:[#allocation5 + $0x3c] sm:$0xf]
    %v108 = vld [vmem:[%s2] sm:$0x1]
    %v110 = vperm.slane %v108, 0
    %v114 = vunpack.c.l.b16 %v90
    %v115 = vunpack.c.l.b16 %v91
    %v116 = vpack.c.b16 %v115, %v114
    %v134 = vunpack.c.l.b16 %v92
    %v135 = vunpack.c.l.b16 %v93
    %v136 = vunpack.c.l.b16 %v94
    %v137 = vunpack.c.l.b16 %v95
    %v138 = vunpack.c.l.b16 %v96
    %v139 = vunpack.c.l.b16 %v97
    %v140 = vunpack.c.l.b16 %v98
    %v141 = vunpack.c.l.b16 %v99
    %v142 = vunpack.c.l.b16 %v100
    %v143 = vunpack.c.l.b16 %v101
    %v144 = vunpack.c.l.b16 %v102
    %v145 = vunpack.c.l.b16 %v103
    %v146 = vunpack.c.l.b16 %v104
    %v147 = vunpack.c.l.b16 %v105
    %v148 = vunpack.c.l.b16 %v106
    %v149 = vunpack.c.l.b16 %v107
    %v150 = vpack.c.b16 %v135, %v134
    %v151 = vpack.c.b16 %v137, %v136
    %v152 = vpack.c.b16 %v139, %v138
    %v153 = vpack.c.b16 %v141, %v140
    %v154 = vpack.c.b16 %v143, %v142
    %v155 = vpack.c.b16 %v145, %v144
    %v156 = vpack.c.b16 %v147, %v146
    %v157 = vpack.c.b16 %v149, %v148
    %166 = vmatpush.bf16.msra.mxu0 %v157
    %167 = vmatpush.bf16.msra.mxu0 %v156
    %168 = vmatpush.bf16.msra.mxu0 %v155
    %169 = vmatpush.bf16.msra.mxu0 %v154
    %170 = vmatpush.bf16.msra.mxu0 %v153
    %171 = vmatpush.bf16.msra.mxu0 %v152
    %172 = vmatpush.bf16.msra.mxu0 %v151
    %173 = vmatpush.bf16.msra.mxu0 %v150
    %174 = vmatmul.bf16.gmra.mxu0 %v116
    %v175 = vpop.f32.mrf.mxu0
    %v176 = vadd.f32 %v110, %v175
    %v177 = vpop.f32.mrf.mxu0
    %v178 = vadd.f32 %v110, %v177
    %179 = vdwg.mxu0
    %v180 = vpack.c.bf16 %v178, %v176
    %v181 = vunpack.c.l.bf16 %v180
    %v182 = vunpack.c.h.bf16 %v180
    %v183 = vtanh.pop %v181
    %v184 = vtanh.pop %v182
    %v185 = vpack.c.bf16 %v184, %v183
    %v186 = vld [vmem:[#allocation7] sm:$0xf]
    %v187 = vld [vmem:[#allocation7 + $0x4] sm:$0xf]
    %v188 = vld [vmem:[#allocation7 + $0x8] sm:$0xf]
    %v189 = vld [vmem:[#allocation7 + $0xc] sm:$0xf]
    %v190 = vld [vmem:[#allocation7 + $0x10] sm:$0xf]
    %v191 = vld [vmem:[#allocation7 + $0x14] sm:$0xf]
    %v192 = vld [vmem:[#allocation7 + $0x18] sm:$0xf]
    %v193 = vld [vmem:[#allocation7 + $0x1c] sm:$0xf]
    %v194 = vld [vmem:[#allocation7 + $0x20] sm:$0xf]
    %v195 = vld [vmem:[#allocation7 + $0x24] sm:$0xf]
    %v196 = vld [vmem:[#allocation7 + $0x28] sm:$0xf]
    %v197 = vld [vmem:[#allocation7 + $0x2c] sm:$0xf]
    %v198 = vld [vmem:[#allocation7 + $0x30] sm:$0xf]
    %v199 = vld [vmem:[#allocation7 + $0x34] sm:$0xf]
    %v200 = vld [vmem:[#allocation7 + $0x38] sm:$0xf]
    %v201 = vld [vmem:[#allocation7 + $0x3c] sm:$0xf]
    %v202 = vld [vmem:[%s4] sm:$0x1]
    %v204 = vperm.slane %v202, 0
    %v222 = vunpack.c.l.b16 %v186
    %v223 = vunpack.c.l.b16 %v187
    %v224 = vunpack.c.l.b16 %v188
    %v225 = vunpack.c.l.b16 %v189
    %v226 = vunpack.c.l.b16 %v190
    %v227 = vunpack.c.l.b16 %v191
    %v228 = vunpack.c.l.b16 %v192
    %v229 = vunpack.c.l.b16 %v193
    %v230 = vunpack.c.l.b16 %v194
    %v231 = vunpack.c.l.b16 %v195
    %v232 = vunpack.c.l.b16 %v196
    %v233 = vunpack.c.l.b16 %v197
    %v234 = vunpack.c.l.b16 %v198
    %v235 = vunpack.c.l.b16 %v199
    %v236 = vunpack.c.l.b16 %v200
    %v237 = vunpack.c.l.b16 %v201
    %v238 = vpack.c.b16 %v223, %v222
    %v239 = vpack.c.b16 %v225, %v224
    %v240 = vpack.c.b16 %v227, %v226
    %v241 = vpack.c.b16 %v229, %v228
    %v242 = vpack.c.b16 %v231, %v230
    %v243 = vpack.c.b16 %v233, %v232
    %v244 = vpack.c.b16 %v235, %v234
    %v245 = vpack.c.b16 %v237, %v236
    %254 = vmatpush.bf16.msra.mxu0 %v245
    %255 = vmatpush.bf16.msra.mxu0 %v244
    %256 = vmatpush.bf16.msra.mxu0 %v243
    %257 = vmatpush.bf16.msra.mxu0 %v242
    %258 = vmatpush.bf16.msra.mxu0 %v241
    %259 = vmatpush.bf16.msra.mxu0 %v240
    %260 = vmatpush.bf16.msra.mxu0 %v239
    %261 = vmatpush.bf16.msra.mxu0 %v238
    %262 = vmatmul.bf16.gmra.mxu0 %v185
    %v263 = vpop.f32.mrf.mxu0
    %v264 = vadd.f32 %v204, %v263
    %v265 = vpop.f32.mrf.mxu0
    %v266 = vadd.f32 %v204, %v265
    %267 = vdwg.mxu0
    %v268 = vpack.c.bf16 %v266, %v264
    %v269 = vunpack.c.l.bf16 %v268
    %v270 = vunpack.c.h.bf16 %v268
    %v271 = vtanh.pop %v269
    %v272 = vtanh.pop %v270
    %v273 = vpack.c.bf16 %v272, %v271
    %v274 = vld [vmem:[#allocation8] sm:$0xf]
    %v275 = vld [vmem:[#allocation8 + $0x4] sm:$0xf]
    %v276 = vld [vmem:[#allocation8 + $0x8] sm:$0xf]
    %v277 = vld [vmem:[#allocation8 + $0xc] sm:$0xf]
    %v278 = vld [vmem:[#allocation8 + $0x10] sm:$0xf]
    %v279 = vld [vmem:[#allocation8 + $0x14] sm:$0xf]
    %v280 = vld [vmem:[#allocation8 + $0x18] sm:$0xf]
    %v281 = vld [vmem:[#allocation8 + $0x1c] sm:$0xf]
    %v282 = vld [vmem:[#allocation8 + $0x20] sm:$0xf]
    %v283 = vld [vmem:[#allocation8 + $0x24] sm:$0xf]
    %v284 = vld [vmem:[#allocation8 + $0x28] sm:$0xf]
    %v285 = vld [vmem:[#allocation8 + $0x2c] sm:$0xf]
    %v286 = vld [vmem:[#allocation8 + $0x30] sm:$0xf]
    %v287 = vld [vmem:[#allocation8 + $0x34] sm:$0xf]
    %v288 = vld [vmem:[#allocation8 + $0x38] sm:$0xf]
    %v289 = vld [vmem:[#allocation8 + $0x3c] sm:$0xf]
    %v290 = vld [vmem:[%s6] sm:$0x1]
    %v292 = vperm.slane %v290, 0
    %v310 = vunpack.c.l.b16 %v274
    %v311 = vunpack.c.l.b16 %v275
    %v312 = vunpack.c.l.b16 %v276
    %v313 = vunpack.c.l.b16 %v277
    %v314 = vunpack.c.l.b16 %v278
    %v315 = vunpack.c.l.b16 %v279
    %v316 = vunpack.c.l.b16 %v280
    %v317 = vunpack.c.l.b16 %v281
    %v318 = vunpack.c.l.b16 %v282
    %v319 = vunpack.c.l.b16 %v283
    %v320 = vunpack.c.l.b16 %v284
    %v321 = vunpack.c.l.b16 %v285
    %v322 = vunpack.c.l.b16 %v286
    %v323 = vunpack.c.l.b16 %v287
    %v324 = vunpack.c.l.b16 %v288
    %v325 = vunpack.c.l.b16 %v289
    %v326 = vpack.c.b16 %v311, %v310
    %v327 = vpack.c.b16 %v313, %v312
    %v328 = vpack.c.b16 %v315, %v314
    %v329 = vpack.c.b16 %v317, %v316
    %v330 = vpack.c.b16 %v319, %v318
    %v331 = vpack.c.b16 %v321, %v320
    %v332 = vpack.c.b16 %v323, %v322
    %v333 = vpack.c.b16 %v325, %v324
    %342 = vmatpush.bf16.msra.mxu0 %v333
    %343 = vmatpush.bf16.msra.mxu0 %v332
    %344 = vmatpush.bf16.msra.mxu0 %v331
    %345 = vmatpush.bf16.msra.mxu0 %v330
    %346 = vmatpush.bf16.msra.mxu0 %v329
    %347 = vmatpush.bf16.msra.mxu0 %v328
    %348 = vmatpush.bf16.msra.mxu0 %v327
    %349 = vmatpush.bf16.msra.mxu0 %v326
    %350 = vmatmul.bf16.gmra.mxu0 %v273
    %v351 = vpop.f32.mrf.mxu0
    %v352 = vadd.f32 %v292, %v351
    %v353 = vpop.f32.mrf.mxu0
    %v354 = vadd.f32 %v292, %v353
    %355 = vdwg.mxu0
    %356 = vst [vmem:[#allocation10] sm:$0xff] %v352
    %357 = vst [vmem:[#allocation10 + $0x8] sm:$0xff] %v354
    // Predicated region
    $region46: #{tpu_custom_call.1} parent=1 // pred_check
      _
    $region47: #{tpu_custom_call.1} parent=1 // pred_check_branch
      %359 = sbr.rel (0) target = $region49
    $region48: #{tpu_custom_call.1} parent=1 // pred_region
      %361 = vsyncadd [#allocation4], 0
      %s362 = sshll.u32 [#allocation10], 4
      %s363 = int_to_ptr.vmem [resolvable:$true] %s362
      %s364 = sshll.u32 %s7, 4
      %s365 = int_to_ptr.hbm [resolvable:$true] %s364
      %370 = dma.vmem_to_hbm [thread:$0]  %s363, 256, %s365, [#allocation4], 128, 128, 8
    $region49: #{tpu_custom_call.1} parent=1 // pred_fallthru
      _
    // Predicated region
    $region50: #{tpu_custom_call.1} parent=1 // pred_check
      _
    $region51: #{tpu_custom_call.1} parent=1 // pred_check_branch
      %372 = sbr.rel (0) target = $region53
    $region52: #{tpu_custom_call.1} parent=1 // pred_region
      %374 = dma.done [#allocation4], 256
    $region53: #{tpu_custom_call.1} parent=1 // pred_fallthru
      _
    %375 = vsyncpa [#allocation3], 1
    %376 = vsyncpa [#allocation6], 1
    %377 = vsyncpa [#allocation9], 1
    %378 = vsyncpa [#allocation4], 1

// kernel: tpu_custom_call.1
$region0: #{tpu_custom_call.1}
  #allocation0 [shape = 'u32[]', space=smem, size = 0x4, offset = 0x4, fixed_abs, tag = 'smem constant byte address 0x4 - core index']
  #allocation1 [shape = 'u32[72,128]{1,0:T(1,128)}', space=vmem, size = 0x9000, scoped, tag = 'internal scratch']
  %s0 = inlined_call_operand.hbm [shape: bf16[16,128], index: 0, kind: input, shape index: {}]
  %s1 = inlined_call_operand.hbm [shape: bf16[128,128], index: 1, kind: input, shape index: {}]
  %s2 = inlined_call_operand.vmem [shape: f32[1,128], index: 2, kind: input, shape index: {}]
  %s3 = inlined_call_operand.hbm [shape: bf16[128,128], index: 3, kind: input, shape index: {}]
  %s4 = inlined_call_operand.vmem [shape: f32[1,128], index: 4, kind: input, shape index: {}]
  %s5 = inlined_call_operand.hbm [shape: bf16[128,128], index: 5, kind: input, shape index: {}]
  %s6 = inlined_call_operand.vmem [shape: f32[1,128], index: 6, kind: input, shape index: {}]
  %s7 = inlined_call_operand.hbm [shape: f32[16,128], index: 7, kind: output, shape index: {}]
  %s8 = sld [smem:[#allocation0]]
  $region54: #{tpu_custom_call.1} parent=0
    _
  %s10 = ssub.s32 1, %s8
  %s11 = scalar_select 0, %s10, %s8
  $region1: #{tpu_custom_call.1} parent=0
    #allocation2 [shape = 'u8[4096]{0}', space=vmem, size = 0x1000, scoped, tag = 'input window, operand 0, single buffered']
    #allocation3 [shape = 's32[1]{0}', space=sflag, size = 0x4, scoped, tag = 'scoped memory for tpu_custom_call.1']
    #allocation4 [shape = 's32[1]{0}', space=sflag, size = 0x4, scoped, tag = 'scoped memory for tpu_custom_call.1']
    #allocation5 [shape = 'u8[32768]{0}', space=vmem, size = 0x8000, scoped, tag = 'input window, operand 1, single buffered']
    #allocation6 [shape = 's32[1]{0}', space=sflag, size = 0x4, scoped, tag = 'scoped memory for tpu_custom_call.1']
    #allocation7 [shape = 'u8[32768]{0}', space=vmem, size = 0x8000, scoped, tag = 'input window, operand 3, single buffered']
    #allocation8 [shape = 'u8[32768]{0}', space=vmem, size = 0x8000, scoped, tag = 'input window, operand 5, single buffered']
    #allocation9 [shape = 's32[1]{0}', space=sflag, size = 0x4, scoped, tag = 'scoped memory for tpu_custom_call.1']
    #allocation10 [shape = 'u8[8192]{0}', space=vmem, size = 0x2000, scoped, tag = 'output window, operand 0, single buffered']
    %12 = vsyncpa [#allocation3], 0
    %13 = vsyncpa [#allocation6], 0
    %14 = vsyncpa [#allocation9], 0
    %15 = vsyncpa [#allocation4], 0
    // Predicated region
    $region2: #{tpu_custom_call.1} parent=1 // pred_check
      _
    $region3: #{tpu_custom_call.1} parent=1 // pred_check_branch
      %17 = sbr.rel (0) target = $region5
    $region4: #{tpu_custom_call.1} parent=1 // pred_region
      %19 = vsyncadd [#allocation3], 0
      %s20 = sshll.u32 %s0, 4
      %s21 = int_to_ptr.hbm [resolvable:$true] %s20
      %s22 = sshll.u32 [#allocation2], 4
      %s23 = int_to_ptr.vmem [resolvable:$true] %s22
      %28 = dma.hbm_to_vmem [thread:$0]  %s21, 128, %s23, [#allocation3], 64, 64, 4
    $region5: #{tpu_custom_call.1} parent=1 // pred_fallthru
      _
    // Predicated region
    $region6: #{tpu_custom_call.1} parent=1 // pred_check
      _
    $region7: #{tpu_custom_call.1} parent=1 // pred_check_branch
      %30 = sbr.rel (0) target = $region9
    $region8: #{tpu_custom_call.1} parent=1 // pred_region
      %32 = vsyncadd [#allocation6], 0
      %s33 = sshll.u32 %s1, 4
      %s34 = int_to_ptr.hbm [resolvable:$true] %s33
      %s35 = sshll.u32 [#allocation5], 4
      %s36 = int_to_ptr.vmem [resolvable:$true] %s35
      %41 = dma.hbm_to_vmem [thread:$0]  %s34, 1024, %s36, [#allocation6], 64, 64, 4
    $region9: #{tpu_custom_call.1} parent=1 // pred_fallthru
      _
    // Predicated region
    $region10: #{tpu_custom_call.1} parent=1 // pred_check
      _
    $region11: #{tpu_custom_call.1} parent=1 // pred_check_branch
      %43 = sbr.rel (0) target = $region13
    $region12: #{tpu_custom_call.1} parent=1 // pred_region
      _
    $region13: #{tpu_custom_call.1} parent=1 // pred_fallthru
      _
    // Predicated region
    $region14: #{tpu_custom_call.1} parent=1 // pred_check
      _
    $region15: #{tpu_custom_call.1} parent=1 // pred_check_branch
      %45 = sbr.rel (0) target = $region17
    $region16: #{tpu_custom_call.1} parent=1 // pred_region
      %47 = vsyncadd [#allocation6], 0
      %s48 = sshll.u32 %s3, 4
      %s49 = int_to_ptr.hbm [resolvable:$true] %s48
      %s50 = sshll.u32 [#allocation7], 4
      %s51 = int_to_ptr.vmem [resolvable:$true] %s50
      %56 = dma.hbm_to_vmem [thread:$0]  %s49, 1024, %s51, [#allocation6], 64, 64, 4
    $region17: #{tpu_custom_call.1} parent=1 // pred_fallthru
      _
    // Predicated region
    $region18: #{tpu_custom_call.1} parent=1 // pred_check
      _
    $region19: #{tpu_custom_call.1} parent=1 // pred_check_branch
      %58 = sbr.rel (0) target = $region21
    $region20: #{tpu_custom_call.1} parent=1 // pred_region
      _
    $region21: #{tpu_custom_call.1} parent=1 // pred_fallthru
      _
    // Predicated region
    $region22: #{tpu_custom_call.1} parent=1 // pred_check
      _
    $region23: #{tpu_custom_call.1} parent=1 // pred_check_branch
      %60 = sbr.rel (0) target = $region25
    $region24: #{tpu_custom_call.1} parent=1 // pred_region
      %62 = vsyncadd [#allocation9], 0
      %s63 = sshll.u32 %s5, 4
      %s64 = int_to_ptr.hbm [resolvable:$true] %s63
      %s65 = sshll.u32 [#allocation8], 4
      %s66 = int_to_ptr.vmem [resolvable:$true] %s65
      %71 = dma.hbm_to_vmem [thread:$0]  %s64, 1024, %s66, [#allocation9], 64, 64, 4
    $region25: #{tpu_custom_call.1} parent=1 // pred_fallthru
      _
    // Predicated region
    $region26: #{tpu_custom_call.1} parent=1 // pred_check
      _
    $region27: #{tpu_custom_call.1} parent=1 // pred_check_branch
      %73 = sbr.rel (0) target = $region29
    $region28: #{tpu_custom_call.1} parent=1 // pred_region
      _
    $region29: #{tpu_custom_call.1} parent=1 // pred_fallthru
      _
    // Predicated region
    $region30: #{tpu_custom_call.1} parent=1 // pred_check
      _
    $region31: #{tpu_custom_call.1} parent=1 // pred_check_branch
      %75 = sbr.rel (0) target = $region33
    $region32: #{tpu_custom_call.1} parent=1 // pred_region
      %77 = dma.done [#allocation3], 128
    $region33: #{tpu_custom_call.1} parent=1 // pred_fallthru
      _
    // Predicated region
    $region34: #{tpu_custom_call.1} parent=1 // pred_check
      _
    $region35: #{tpu_custom_call.1} parent=1 // pred_check_branch
      %79 = sbr.rel (0) target = $region37
    $region36: #{tpu_custom_call.1} parent=1 // pred_region
      %81 = dma.done [#allocation6], 1024
    $region37: #{tpu_custom_call.1} parent=1 // pred_fallthru
      _
    // Predicated region
    $region38: #{tpu_custom_call.1} parent=1 // pred_check
      _
    $region39: #{tpu_custom_call.1} parent=1 // pred_check_branch
      %83 = sbr.rel (0) target = $region41
    $region40: #{tpu_custom_call.1} parent=1 // pred_region
      %85 = dma.done [#allocation6], 1024
    $region41: #{tpu_custom_call.1} parent=1 // pred_fallthru
      _
    // Predicated region
    $region42: #{tpu_custom_call.1} parent=1 // pred_check
      _
    $region43: #{tpu_custom_call.1} parent=1 // pred_check_branch
      %87 = sbr.rel (0) target = $region45
    $region44: #{tpu_custom_call.1} parent=1 // pred_region
      %89 = dma.done [#allocation9], 1024
    $region45: #{tpu_custom_call.1} parent=1 // pred_fallthru
      _
    %v90 = vld [vmem:[#allocation2] sm:$0xf]
    %v91 = vld [vmem:[#allocation2 + $0x4] sm:$0xf]
    %v92 = vld [vmem:[#allocation5] sm:$0xf]
    %v93 = vld [vmem:[#allocation5 + $0x4] sm:$0xf]
    %v94 = vld [vmem:[#allocation5 + $0x8] sm:$0xf]
    %v95 = vld [vmem:[#allocation5 + $0xc] sm:$0xf]
    %v96 = vld [vmem:[#allocation5 + $0x10] sm:$0xf]
    %v97 = vld [vmem:[#allocation5 + $0x14] sm:$0xf]
    %v98 = vld [vmem:[#allocation5 + $0x18] sm:$0xf]
    %v99 = vld [vmem:[#allocation5 + $0x1c] sm:$0xf]
    %v100 = vld [vmem:[#allocation5 + $0x20] sm:$0xf]
    %v101 = vld [vmem:[#allocation5 + $0x24] sm:$0xf]
    %v102 = vld [vmem:[#allocation5 + $0x28] sm:$0xf]
    %v103 = vld [vmem:[#allocation5 + $0x2c] sm:$0xf]
    %v104 = vld [vmem:[#allocation5 + $0x30] sm:$0xf]
    %v105 = vld [vmem:[#allocation5 + $0x34] sm:$0xf]
    %v106 = vld [vmem:[#allocation5 + $0x38] sm:$0xf]
    %v107 = vld [vmem:[#allocation5 + $0x3c] sm:$0xf]
    %v108 = vld [vmem:[%s2] sm:$0x1]
    %v110 = vperm.slane %v108, 0
    %v114 = vunpack.c.l.b16 %v90
    %v115 = vunpack.c.l.b16 %v91
    %v116 = vpack.c.b16 %v115, %v114
    %v134 = vunpack.c.l.b16 %v92
    %v135 = vunpack.c.l.b16 %v93
    %v136 = vunpack.c.l.b16 %v94
    %v137 = vunpack.c.l.b16 %v95
    %v138 = vunpack.c.l.b16 %v96
    %v139 = vunpack.c.l.b16 %v97
    %v140 = vunpack.c.l.b16 %v98
    %v141 = vunpack.c.l.b16 %v99
    %v142 = vunpack.c.l.b16 %v100
    %v143 = vunpack.c.l.b16 %v101
    %v144 = vunpack.c.l.b16 %v102
    %v145 = vunpack.c.l.b16 %v103
    %v146 = vunpack.c.l.b16 %v104
    %v147 = vunpack.c.l.b16 %v105
    %v148 = vunpack.c.l.b16 %v106
    %v149 = vunpack.c.l.b16 %v107
    %v150 = vpack.c.b16 %v135, %v134
    %v151 = vpack.c.b16 %v137, %v136
    %v152 = vpack.c.b16 %v139, %v138
    %v153 = vpack.c.b16 %v141, %v140
    %v154 = vpack.c.b16 %v143, %v142
    %v155 = vpack.c.b16 %v145, %v144
    %v156 = vpack.c.b16 %v147, %v146
    %v157 = vpack.c.b16 %v149, %v148
    %166 = vmatpush.bf16.msra.mxu0 %v157
    %167 = vmatpush.bf16.msra.mxu0 %v156
    %168 = vmatpush.bf16.msra.mxu0 %v155
    %169 = vmatpush.bf16.msra.mxu0 %v154
    %170 = vmatpush.bf16.msra.mxu0 %v153
    %171 = vmatpush.bf16.msra.mxu0 %v152
    %172 = vmatpush.bf16.msra.mxu0 %v151
    %173 = vmatpush.bf16.msra.mxu0 %v150
    %174 = vmatmul.bf16.gmra.mxu0 %v116
    %v175 = vpop.f32.mrf.mxu0
    %v176 = vadd.f32 %v110, %v175
    %v177 = vpop.f32.mrf.mxu0
    %v178 = vadd.f32 %v110, %v177
    %179 = vdwg.mxu0
    %v180 = vpack.c.bf16 %v178, %v176
    %v181 = vunpack.c.l.bf16 %v180
    %v182 = vunpack.c.h.bf16 %v180
    %v183 = vtanh.pop %v181
    %v184 = vtanh.pop %v182
    %v185 = vpack.c.bf16 %v184, %v183
    %v186 = vld [vmem:[#allocation7] sm:$0xf]
    %v187 = vld [vmem:[#allocation7 + $0x4] sm:$0xf]
    %v188 = vld [vmem:[#allocation7 + $0x8] sm:$0xf]
    %v189 = vld [vmem:[#allocation7 + $0xc] sm:$0xf]
    %v190 = vld [vmem:[#allocation7 + $0x10] sm:$0xf]
    %v191 = vld [vmem:[#allocation7 + $0x14] sm:$0xf]
    %v192 = vld [vmem:[#allocation7 + $0x18] sm:$0xf]
    %v193 = vld [vmem:[#allocation7 + $0x1c] sm:$0xf]
    %v194 = vld [vmem:[#allocation7 + $0x20] sm:$0xf]
    %v195 = vld [vmem:[#allocation7 + $0x24] sm:$0xf]
    %v196 = vld [vmem:[#allocation7 + $0x28] sm:$0xf]
    %v197 = vld [vmem:[#allocation7 + $0x2c] sm:$0xf]
    %v198 = vld [vmem:[#allocation7 + $0x30] sm:$0xf]
    %v199 = vld [vmem:[#allocation7 + $0x34] sm:$0xf]
    %v200 = vld [vmem:[#allocation7 + $0x38] sm:$0xf]
    %v201 = vld [vmem:[#allocation7 + $0x3c] sm:$0xf]
    %v202 = vld [vmem:[%s4] sm:$0x1]
    %v204 = vperm.slane %v202, 0
    %v222 = vunpack.c.l.b16 %v186
    %v223 = vunpack.c.l.b16 %v187
    %v224 = vunpack.c.l.b16 %v188
    %v225 = vunpack.c.l.b16 %v189
    %v226 = vunpack.c.l.b16 %v190
    %v227 = vunpack.c.l.b16 %v191
    %v228 = vunpack.c.l.b16 %v192
    %v229 = vunpack.c.l.b16 %v193
    %v230 = vunpack.c.l.b16 %v194
    %v231 = vunpack.c.l.b16 %v195
    %v232 = vunpack.c.l.b16 %v196
    %v233 = vunpack.c.l.b16 %v197
    %v234 = vunpack.c.l.b16 %v198
    %v235 = vunpack.c.l.b16 %v199
    %v236 = vunpack.c.l.b16 %v200
    %v237 = vunpack.c.l.b16 %v201
    %v238 = vpack.c.b16 %v223, %v222
    %v239 = vpack.c.b16 %v225, %v224
    %v240 = vpack.c.b16 %v227, %v226
    %v241 = vpack.c.b16 %v229, %v228
    %v242 = vpack.c.b16 %v231, %v230
    %v243 = vpack.c.b16 %v233, %v232
    %v244 = vpack.c.b16 %v235, %v234
    %v245 = vpack.c.b16 %v237, %v236
    %254 = vmatpush.bf16.msra.mxu0 %v245
    %255 = vmatpush.bf16.msra.mxu0 %v244
    %256 = vmatpush.bf16.msra.mxu0 %v243
    %257 = vmatpush.bf16.msra.mxu0 %v242
    %258 = vmatpush.bf16.msra.mxu0 %v241
    %259 = vmatpush.bf16.msra.mxu0 %v240
    %260 = vmatpush.bf16.msra.mxu0 %v239
    %261 = vmatpush.bf16.msra.mxu0 %v238
    %262 = vmatmul.bf16.gmra.mxu0 %v185
    %v263 = vpop.f32.mrf.mxu0
    %v264 = vadd.f32 %v204, %v263
    %v265 = vpop.f32.mrf.mxu0
    %v266 = vadd.f32 %v204, %v265
    %267 = vdwg.mxu0
    %v268 = vpack.c.bf16 %v266, %v264
    %v269 = vunpack.c.l.bf16 %v268
    %v270 = vunpack.c.h.bf16 %v268
    %v271 = vtanh.pop %v269
    %v272 = vtanh.pop %v270
    %v273 = vpack.c.bf16 %v272, %v271
    %v274 = vld [vmem:[#allocation8] sm:$0xf]
    %v275 = vld [vmem:[#allocation8 + $0x4] sm:$0xf]
    %v276 = vld [vmem:[#allocation8 + $0x8] sm:$0xf]
    %v277 = vld [vmem:[#allocation8 + $0xc] sm:$0xf]
    %v278 = vld [vmem:[#allocation8 + $0x10] sm:$0xf]
    %v279 = vld [vmem:[#allocation8 + $0x14] sm:$0xf]
    %v280 = vld [vmem:[#allocation8 + $0x18] sm:$0xf]
    %v281 = vld [vmem:[#allocation8 + $0x1c] sm:$0xf]
    %v282 = vld [vmem:[#allocation8 + $0x20] sm:$0xf]
    %v283 = vld [vmem:[#allocation8 + $0x24] sm:$0xf]
    %v284 = vld [vmem:[#allocation8 + $0x28] sm:$0xf]
    %v285 = vld [vmem:[#allocation8 + $0x2c] sm:$0xf]
    %v286 = vld [vmem:[#allocation8 + $0x30] sm:$0xf]
    %v287 = vld [vmem:[#allocation8 + $0x34] sm:$0xf]
    %v288 = vld [vmem:[#allocation8 + $0x38] sm:$0xf]
    %v289 = vld [vmem:[#allocation8 + $0x3c] sm:$0xf]
    %v290 = vld [vmem:[%s6] sm:$0x1]
    %v292 = vperm.slane %v290, 0
    %v310 = vunpack.c.l.b16 %v274
    %v311 = vunpack.c.l.b16 %v275
    %v312 = vunpack.c.l.b16 %v276
    %v313 = vunpack.c.l.b16 %v277
    %v314 = vunpack.c.l.b16 %v278
    %v315 = vunpack.c.l.b16 %v279
    %v316 = vunpack.c.l.b16 %v280
    %v317 = vunpack.c.l.b16 %v281
    %v318 = vunpack.c.l.b16 %v282
    %v319 = vunpack.c.l.b16 %v283
    %v320 = vunpack.c.l.b16 %v284
    %v321 = vunpack.c.l.b16 %v285
    %v322 = vunpack.c.l.b16 %v286
    %v323 = vunpack.c.l.b16 %v287
    %v324 = vunpack.c.l.b16 %v288
    %v325 = vunpack.c.l.b16 %v289
    %v326 = vpack.c.b16 %v311, %v310
    %v327 = vpack.c.b16 %v313, %v312
    %v328 = vpack.c.b16 %v315, %v314
    %v329 = vpack.c.b16 %v317, %v316
    %v330 = vpack.c.b16 %v319, %v318
    %v331 = vpack.c.b16 %v321, %v320
    %v332 = vpack.c.b16 %v323, %v322
    %v333 = vpack.c.b16 %v325, %v324
    %342 = vmatpush.bf16.msra.mxu0 %v333
    %343 = vmatpush.bf16.msra.mxu0 %v332
    %344 = vmatpush.bf16.msra.mxu0 %v331
    %345 = vmatpush.bf16.msra.mxu0 %v330
    %346 = vmatpush.bf16.msra.mxu0 %v329
    %347 = vmatpush.bf16.msra.mxu0 %v328
    %348 = vmatpush.bf16.msra.mxu0 %v327
    %349 = vmatpush.bf16.msra.mxu0 %v326
    %350 = vmatmul.bf16.gmra.mxu0 %v273
    %v351 = vpop.f32.mrf.mxu0
    %v352 = vadd.f32 %v292, %v351
    %v353 = vpop.f32.mrf.mxu0
    %v354 = vadd.f32 %v292, %v353
    %355 = vdwg.mxu0
    %356 = vst [vmem:[#allocation10] sm:$0xff] %v352
    %357 = vst [vmem:[#allocation10 + $0x8] sm:$0xff] %v354
    // Predicated region
    $region46: #{tpu_custom_call.1} parent=1 // pred_check
      _
    $region47: #{tpu_custom_call.1} parent=1 // pred_check_branch
      %359 = sbr.rel (0) target = $region49
    $region48: #{tpu_custom_call.1} parent=1 // pred_region
      %361 = vsyncadd [#allocation4], 0
      %s362 = sshll.u32 [#allocation10], 4
      %s363 = int_to_ptr.vmem [resolvable:$true] %s362
      %s364 = sshll.u32 %s7, 4
      %s365 = int_to_ptr.hbm [resolvable:$true] %s364
      %370 = dma.vmem_to_hbm [thread:$0]  %s363, 256, %s365, [#allocation4], 128, 128, 8
    $region49: #{tpu_custom_call.1} parent=1 // pred_fallthru
      _
    // Predicated region
    $region50: #{tpu_custom_call.1} parent=1 // pred_check
      _
    $region51: #{tpu_custom_call.1} parent=1 // pred_check_branch
      %372 = sbr.rel (0) target = $region53
    $region52: #{tpu_custom_call.1} parent=1 // pred_region
      %374 = dma.done [#allocation4], 256
    $region53: #{tpu_custom_call.1} parent=1 // pred_fallthru
      _
    %375 = vsyncpa [#allocation3], 1
    %376 = vsyncpa [#allocation6], 1
    %377 = vsyncpa [#allocation9], 1
    %378 = vsyncpa [#allocation4], 1

</llo_original>
